<compile_context>
chip_gen: v7x
topology: tpu7x:2x2x1
jax: 0.10.0
libtpu: 0.0.40
codegen_flags: <defaults>
</compile_context>

<pallas_src>
import functools

import jax
import jax.numpy as jnp
from jax import lax
from jax.experimental import pallas as pl
from jax.experimental.pallas import tpu as pltpu


def _resnet_kernel(num_blocks, in_dim, k_pad, x_ref, w_ref, bh_ref, out_ref, x32_ref):
    """Fused forward pass for one batch tile.

    x_ref    : (TB, in_dim)   f32   raw input (no wrapper pad/cast)
    w_ref    : (1+2B, H, H)   bf16  stacked [W0_pad, W1_0, W2_0, W1_1, W2_1, ...]
    bh_ref   : (1+2B+2, H)    f32   stacked [b0, b1_0, b2_0, ..., Wf_row, bf_row]
    out_ref  : (1, 1, TB)     f32   lane-dense output row (batch on lanes)
    x32_ref  : (TB, k_pad)    bf16  scratch: bf16-cast, zero-padded input
    """
    # Build the bf16, 16-aligned input tile in VMEM scratch (zero pad columns).
    x32_ref[...] = jnp.zeros_like(x32_ref)
    x32_ref[:, 0:in_dim] = x_ref[...].astype(jnp.bfloat16)

    # Input projection: Linear -> ReLU (Dropout == identity at inference).
    # First matmul contracts only over k_pad (32) rows of the padded W0 slab.
    h = jnp.dot(x32_ref[...], w_ref[0, 0:k_pad, :],
                preferred_element_type=jnp.float32)
    h = jnp.maximum(h + bh_ref[0:1, :], 0.0)

    # Residual blocks: Linear -> ReLU -> Linear, add identity, ReLU.
    # Static Python unroll; all slab indices are compile-time constants.
    for i in range(num_blocks):
        w1 = w_ref[1 + 2 * i]
        w2 = w_ref[2 + 2 * i]
        b1 = bh_ref[1 + 2 * i:2 + 2 * i, :]
        b2 = bh_ref[2 + 2 * i:3 + 2 * i, :]
        t = jnp.dot(h.astype(jnp.bfloat16), w1,
                    preferred_element_type=jnp.float32) + b1
        t = jnp.maximum(t, 0.0)
        t = jnp.dot(t.astype(jnp.bfloat16), w2,
                    preferred_element_type=jnp.float32) + b2
        h = jnp.maximum(h + t, 0.0)

    # Output head (out_dim == 1): single MXU pass wf(1,H) contracted with h(TB,H)
    # over H -> (1, TB) lane-dense row (avoids a masked (TB,1) column store).
    lw = 1 + 2 * num_blocks
    wf_row = bh_ref[lw:lw + 1, :].astype(jnp.bfloat16)          # (1, H)
    bf = bh_ref[lw + 1:lw + 2, 0:1]                             # (1, 1) f32
    out_row = lax.dot_general(
        wf_row, h.astype(jnp.bfloat16),
        dimension_numbers=(((1,), (1,)), ((), ())),
        preferred_element_type=jnp.float32)                      # (1, TB)
    out_ref[0] = (out_row + bf).astype(out_ref.dtype)


def resnet_forward(x, packed, num_blocks, *, batch_tile=None):
    """x: (batch, input_dim) f32. packed = (w_stack, bh_stack)."""
    w_stack, bh_stack = packed
    batch, in_dim = x.shape
    hidden = w_stack.shape[-1]
    L = w_stack.shape[0]
    LB = bh_stack.shape[0]
    assert in_dim <= hidden

    # Default: one grid step (single-TC v5e/v6e; on v7x only shard for big batches).
    if batch_tile is None:
        batch_tile = batch
    assert batch % batch_tile == 0
    num_tiles = batch // batch_tile
    if num_tiles > 1:
        # bf16 sublane packing: 16-row granularity for the hidden activations.
        assert batch_tile % 16 == 0

    # Pad the contraction of the first matmul to a bf16 sublane multiple.
    k_pad = min(hidden, ((in_dim + 15) // 16) * 16)

    kernel = functools.partial(_resnet_kernel, num_blocks, in_dim, k_pad)

    out = pl.pallas_call(
        kernel,
        out_shape=jax.ShapeDtypeStruct((num_tiles, 1, batch_tile), jnp.float32),
        grid=(num_tiles,),
        in_specs=[
            pl.BlockSpec((batch_tile, in_dim), lambda i: (i, 0)),
            # Whole-slab blocks with constant index maps: fetched once, reused
            # across all batch tiles.
            pl.BlockSpec((L, hidden, hidden), lambda i: (0, 0, 0)),
            pl.BlockSpec((LB, hidden), lambda i: (0, 0)),
        ],
        out_specs=pl.BlockSpec((1, 1, batch_tile), lambda i: (i, 0, 0)),
        scratch_shapes=[pltpu.VMEM((batch_tile, k_pad), jnp.bfloat16)],
        compiler_params=pltpu.CompilerParams(
            dimension_semantics=("parallel",),
        ),
    )(x, w_stack, bh_stack)

    # (num_tiles, 1, batch_tile) -> (batch, 1): tiles are contiguous batch rows.
    return out.reshape(batch, 1)


def _init_linear(key, fan_in, fan_out):
    """Deterministic PyTorch-style init: U(-1/sqrt(fan_in), 1/sqrt(fan_in))."""
    kw, kb = jax.random.split(key)
    bound = 1.0 / jnp.sqrt(jnp.float32(fan_in))
    w = jax.random.uniform(kw, (fan_in, fan_out), jnp.float32, -bound, bound)
    b = jax.random.uniform(kb, (1, fan_out), jnp.float32, -bound, bound)
    return w, b


def make_params(key, input_dim, hidden, num_blocks, output_dim):
    keys = jax.random.split(key, 2 + 2 * num_blocks)
    params = []
    w0, b0 = _init_linear(keys[0], input_dim, hidden)
    params += [w0, b0]
    for i in range(num_blocks):
        w1, b1 = _init_linear(keys[1 + 2 * i], hidden, hidden)
        w2, b2 = _init_linear(keys[2 + 2 * i], hidden, hidden)
        params += [w1, b1, w2, b2]
    wf, bf = _init_linear(keys[-1], hidden, output_dim)
    params += [wf, bf]
    return params


def pack_params(params, input_dim, hidden, num_blocks):
    """Pack the flat param list into 2 stacked kernel operands."""
    w0, b0 = params[0], params[1]
    w0_pad = jnp.zeros((hidden, hidden), jnp.float32).at[:input_dim, :].set(w0)
    ws = [w0_pad]
    bs = [b0.reshape(hidden)]
    for i in range(num_blocks):
        w1, b1, w2, b2 = params[2 + 4 * i:6 + 4 * i]
        ws += [w1, w2]
        bs += [b1.reshape(hidden), b2.reshape(hidden)]
    wf, bf = params[-2], params[-1]
    assert wf.shape[1] == 1, "kernel head assumes output_dim == 1"
    bs.append(wf.reshape(hidden))                                   # Wf as a row
    bs.append(jnp.zeros((hidden,), jnp.float32).at[0].set(bf.reshape(())))  # [bf,0,..]
    w_stack = jnp.stack(ws).astype(jnp.bfloat16)    # (1+2B,   H, H) bf16
    bh_stack = jnp.stack(bs).astype(jnp.float32)    # (1+2B+2, H)    f32
    return w_stack, bh_stack


def reference_forward_bf16(x, params, num_blocks):
    """Pure-JAX reference mirroring the kernel's bf16-matmul / f32-accumulate math."""
    def bdot(a, w):
        return jnp.dot(a.astype(jnp.bfloat16), w.astype(jnp.bfloat16),
                       preferred_element_type=jnp.float32)
    w0, b0 = params[0], params[1]
    h = jnp.maximum(bdot(x, w0) + b0, 0.0)
    for i in range(num_blocks):
        w1, b1, w2, b2 = params[2 + 4 * i:6 + 4 * i]
        t = jnp.maximum(bdot(h, w1) + b1, 0.0)
        t = bdot(t, w2) + b2
        h = jnp.maximum(h + t, 0.0)
    wf, bf = params[-2], params[-1]
    return bdot(h, wf) + bf


def reference_forward_f32(x, params, num_blocks):
    """Full-f32 reference (mirrors the PyTorch module in eval mode)."""
    w0, b0 = params[0], params[1]
    h = jnp.maximum(x @ w0 + b0, 0.0)
    for i in range(num_blocks):
        w1, b1, w2, b2 = params[2 + 4 * i:6 + 4 * i]
        t = jnp.maximum(h @ w1 + b1, 0.0)
        t = t @ w2 + b2
        h = jnp.maximum(h + t, 0.0)
    wf, bf = params[-2], params[-1]
    return h @ wf + bf


if __name__ == "__main__":
    # Small shapes consistent with the module: input_dim=24 (module default),
    # hidden width 128, 2 residual blocks, scalar regression output.
    # Batch 128 fills the MXU rows in a single grid step (no tiling overhead).
    BATCH = 128
    INPUT_DIM = 24
    HIDDEN = 128
    NUM_BLOCKS = 2
    OUTPUT_DIM = 1

    key = jax.random.PRNGKey(0)
    kx, kp = jax.random.split(key)
    x = jax.random.normal(kx, (BATCH, INPUT_DIM), jnp.float32)
    params = make_params(kp, INPUT_DIM, HIDDEN, NUM_BLOCKS, OUTPUT_DIM)
    packed = pack_params(params, INPUT_DIM, HIDDEN, NUM_BLOCKS)

    out = resnet_forward(x, packed, NUM_BLOCKS)     # batch_tile defaults to batch
    out = jax.block_until_ready(out)
    assert out.shape == (BATCH, OUTPUT_DIM), out.shape

    # Tight check against a reference that mirrors the kernel's bf16 matmuls.
    ref_b = reference_forward_bf16(x, params, NUM_BLOCKS)
    assert jnp.allclose(out, ref_b, atol=2e-3, rtol=2e-3), "mismatch vs bf16 reference"

    # Loose sanity check against the full-f32 (PyTorch-equivalent) reference.
    ref_f = reference_forward_f32(x, params, NUM_BLOCKS)
    assert jnp.allclose(out, ref_f, atol=1e-1, rtol=1e-1), "mismatch vs f32 reference"

    print("KERNEL_OK")
</pallas_src>

<mosaic_0001>
module attributes {stable_mosaic.version = 11 : i64} {
  func.func @_resnet_kernel(%arg0: i32, %arg1: memref<128x24xf32, #tpu.memory_space<vmem>>, %arg2: memref<5x128x128xbf16, #tpu.memory_space<vmem>>, %arg3: memref<7x128xf32, #tpu.memory_space<vmem>>, %arg4: memref<1x1x128xf32, #tpu.memory_space<vmem>>, %arg5: memref<128x32xbf16, #tpu.memory_space<vmem>>) attributes {dimension_semantics = [#tpu.dimension_semantics<parallel>], iteration_bounds = array<i64: 1>, scalar_prefetch = 0 : i64, scratch_operands = 1 : i64, tpu.core_type = #tpu.core_type<tc>, window_params = [{transform_indices = @transform_0, window_bounds = array<i64: 128, 24>}, {pipeline_mode = #tpu.pipeline_mode<synchronous>, transform_indices = @transform_1, window_bounds = array<i64: 5, 128, 128>}, {pipeline_mode = #tpu.pipeline_mode<synchronous>, transform_indices = @transform_2, window_bounds = array<i64: 7, 128>}, {transform_indices = @transform_3, window_bounds = array<i64: 1, 1, 128>}]} {
    %cst = arith.constant 0.000000e+00 : bf16
    %0 = vector.broadcast %cst : bf16 to vector<128x32xbf16>
    %c0 = arith.constant 0 : index
    %c0_0 = arith.constant 0 : index
    %1 = vector.load %arg5[%c0, %c0_0] : memref<128x32xbf16, #tpu.memory_space<vmem>>, vector<128x32xbf16>
    tpu.vector_store %arg5[%c0, %c0_0], %0 {strides = array<i32>} : memref<128x32xbf16, #tpu.memory_space<vmem>>, vector<128x32xbf16>,
    %c0_1 = arith.constant 0 : index
    %c0_2 = arith.constant 0 : index
    %2 = vector.load %arg1[%c0_1, %c0_2] : memref<128x24xf32, #tpu.memory_space<vmem>>, vector<128x24xf32>
    %3 = arith.truncf %2 : vector<128x24xf32> to vector<128x24xbf16>
    %c0_3 = arith.constant 0 : index
    %c0_4 = arith.constant 0 : index
    %4 = vector.load %arg5[%c0_3, %c0_4] : memref<128x32xbf16, #tpu.memory_space<vmem>>, vector<128x24xbf16>
    tpu.vector_store %arg5[%c0_3, %c0_4], %3 {strides = array<i32>} : memref<128x32xbf16, #tpu.memory_space<vmem>>, vector<128x24xbf16>,
    %c0_5 = arith.constant 0 : index
    %c0_6 = arith.constant 0 : index
    %5 = vector.load %arg5[%c0_5, %c0_6] : memref<128x32xbf16, #tpu.memory_space<vmem>>, vector<128x32xbf16>
    %c0_7 = arith.constant 0 : index
    %c0_8 = arith.constant 0 : index
    %c0_9 = arith.constant 0 : index
    %6 = vector.load %arg2[%c0_7, %c0_8, %c0_9] : memref<5x128x128xbf16, #tpu.memory_space<vmem>>, vector<1x32x128xbf16>
    %7 = vector.shape_cast %6 : vector<1x32x128xbf16> to vector<32x128xbf16>
    %cst_10 = arith.constant dense<0.000000e+00> : vector<128x128xf32>
    %8 = tpu.matmul %5, %7, %cst_10 {dimension_numbers = #tpu.dot_dimension_numbers<[1], [0], [0], [1], [0, 0, 1, 1], [], []>} : vector<128x32xbf16>, vector<32x128xbf16>, vector<128x128xf32> -> vector<128x128xf32>
    %c0_11 = arith.constant 0 : index
    %c0_12 = arith.constant 0 : index
    %9 = vector.load %arg3[%c0_11, %c0_12] : memref<7x128xf32, #tpu.memory_space<vmem>>, vector<1x128xf32>
    %10 = vector.broadcast %9 : vector<1x128xf32> to vector<128x128xf32>
    %11 = arith.addf %8, %10 : vector<128x128xf32>
    %cst_13 = arith.constant 0.000000e+00 : f32
    %12 = vector.broadcast %cst_13 : f32 to vector<128x128xf32>
    %13 = arith.maximumf %11, %12 : vector<128x128xf32>
    %c1 = arith.constant 1 : index
    %c0_14 = arith.constant 0 : index
    %c0_15 = arith.constant 0 : index
    %14 = vector.load %arg2[%c1, %c0_14, %c0_15] : memref<5x128x128xbf16, #tpu.memory_space<vmem>>, vector<1x128x128xbf16>
    %15 = vector.shape_cast %14 : vector<1x128x128xbf16> to vector<128x128xbf16>
    %c2 = arith.constant 2 : index
    %c0_16 = arith.constant 0 : index
    %c0_17 = arith.constant 0 : index
    %16 = vector.load %arg2[%c2, %c0_16, %c0_17] : memref<5x128x128xbf16, #tpu.memory_space<vmem>>, vector<1x128x128xbf16>
    %17 = vector.shape_cast %16 : vector<1x128x128xbf16> to vector<128x128xbf16>
    %c1_18 = arith.constant 1 : index
    %c0_19 = arith.constant 0 : index
    %18 = vector.load %arg3[%c1_18, %c0_19] : memref<7x128xf32, #tpu.memory_space<vmem>>, vector<1x128xf32>
    %c2_20 = arith.constant 2 : index
    %c0_21 = arith.constant 0 : index
    %19 = vector.load %arg3[%c2_20, %c0_21] : memref<7x128xf32, #tpu.memory_space<vmem>>, vector<1x128xf32>
    %20 = arith.truncf %13 : vector<128x128xf32> to vector<128x128xbf16>
    %cst_22 = arith.constant dense<0.000000e+00> : vector<128x128xf32>
    %21 = tpu.matmul %20, %15, %cst_22 {dimension_numbers = #tpu.dot_dimension_numbers<[1], [0], [0], [1], [0, 0, 1, 1], [], []>} : vector<128x128xbf16>, vector<128x128xbf16>, vector<128x128xf32> -> vector<128x128xf32>
    %22 = vector.broadcast %18 : vector<1x128xf32> to vector<128x128xf32>
    %23 = arith.addf %21, %22 : vector<128x128xf32>
    %cst_23 = arith.constant 0.000000e+00 : f32
    %24 = vector.broadcast %cst_23 : f32 to vector<128x128xf32>
    %25 = arith.maximumf %23, %24 : vector<128x128xf32>
    %26 = arith.truncf %25 : vector<128x128xf32> to vector<128x128xbf16>
    %cst_24 = arith.constant dense<0.000000e+00> : vector<128x128xf32>
    %27 = tpu.matmul %26, %17, %cst_24 {dimension_numbers = #tpu.dot_dimension_numbers<[1], [0], [0], [1], [0, 0, 1, 1], [], []>} : vector<128x128xbf16>, vector<128x128xbf16>, vector<128x128xf32> -> vector<128x128xf32>
    %28 = vector.broadcast %19 : vector<1x128xf32> to vector<128x128xf32>
    %29 = arith.addf %27, %28 : vector<128x128xf32>
    %30 = arith.addf %13, %29 : vector<128x128xf32>
    %cst_25 = arith.constant 0.000000e+00 : f32
    %31 = vector.broadcast %cst_25 : f32 to vector<128x128xf32>
    %32 = arith.maximumf %30, %31 : vector<128x128xf32>
    %c3 = arith.constant 3 : index
    %c0_26 = arith.constant 0 : index
    %c0_27 = arith.constant 0 : index
    %33 = vector.load %arg2[%c3, %c0_26, %c0_27] : memref<5x128x128xbf16, #tpu.memory_space<vmem>>, vector<1x128x128xbf16>
    %34 = vector.shape_cast %33 : vector<1x128x128xbf16> to vector<128x128xbf16>
    %c4 = arith.constant 4 : index
    %c0_28 = arith.constant 0 : index
    %c0_29 = arith.constant 0 : index
    %35 = vector.load %arg2[%c4, %c0_28, %c0_29] : memref<5x128x128xbf16, #tpu.memory_space<vmem>>, vector<1x128x128xbf16>
    %36 = vector.shape_cast %35 : vector<1x128x128xbf16> to vector<128x128xbf16>
    %c3_30 = arith.constant 3 : index
    %c0_31 = arith.constant 0 : index
    %37 = vector.load %arg3[%c3_30, %c0_31] : memref<7x128xf32, #tpu.memory_space<vmem>>, vector<1x128xf32>
    %c4_32 = arith.constant 4 : index
    %c0_33 = arith.constant 0 : index
    %38 = vector.load %arg3[%c4_32, %c0_33] : memref<7x128xf32, #tpu.memory_space<vmem>>, vector<1x128xf32>
    %39 = arith.truncf %32 : vector<128x128xf32> to vector<128x128xbf16>
    %cst_34 = arith.constant dense<0.000000e+00> : vector<128x128xf32>
    %40 = tpu.matmul %39, %34, %cst_34 {dimension_numbers = #tpu.dot_dimension_numbers<[1], [0], [0], [1], [0, 0, 1, 1], [], []>} : vector<128x128xbf16>, vector<128x128xbf16>, vector<128x128xf32> -> vector<128x128xf32>
    %41 = vector.broadcast %37 : vector<1x128xf32> to vector<128x128xf32>
    %42 = arith.addf %40, %41 : vector<128x128xf32>
    %cst_35 = arith.constant 0.000000e+00 : f32
    %43 = vector.broadcast %cst_35 : f32 to vector<128x128xf32>
    %44 = arith.maximumf %42, %43 : vector<128x128xf32>
    %45 = arith.truncf %44 : vector<128x128xf32> to vector<128x128xbf16>
    %cst_36 = arith.constant dense<0.000000e+00> : vector<128x128xf32>
    %46 = tpu.matmul %45, %36, %cst_36 {dimension_numbers = #tpu.dot_dimension_numbers<[1], [0], [0], [1], [0, 0, 1, 1], [], []>} : vector<128x128xbf16>, vector<128x128xbf16>, vector<128x128xf32> -> vector<128x128xf32>
    %47 = vector.broadcast %38 : vector<1x128xf32> to vector<128x128xf32>
    %48 = arith.addf %46, %47 : vector<128x128xf32>
    %49 = arith.addf %32, %48 : vector<128x128xf32>
    %cst_37 = arith.constant 0.000000e+00 : f32
    %50 = vector.broadcast %cst_37 : f32 to vector<128x128xf32>
    %51 = arith.maximumf %49, %50 : vector<128x128xf32>
    %c5 = arith.constant 5 : index
    %c0_38 = arith.constant 0 : index
    %52 = vector.load %arg3[%c5, %c0_38] : memref<7x128xf32, #tpu.memory_space<vmem>>, vector<1x128xf32>
    %53 = arith.truncf %52 : vector<1x128xf32> to vector<1x128xbf16>
    %c6 = arith.constant 6 : index
    %c0_39 = arith.constant 0 : index
    %54 = vector.load %arg3[%c6, %c0_39] : memref<7x128xf32, #tpu.memory_space<vmem>>, vector<1x1xf32>
    %55 = arith.truncf %51 : vector<128x128xf32> to vector<128x128xbf16>
    %cst_40 = arith.constant dense<0.000000e+00> : vector<1x128xf32>
    %56 = tpu.matmul %53, %55, %cst_40 {dimension_numbers = #tpu.dot_dimension_numbers<[1], [1], [0], [0], [0, 0, 1, 0], [], []>} : vector<1x128xbf16>, vector<128x128xbf16>, vector<1x128xf32> -> vector<1x128xf32>
    %57 = vector.broadcast %54 : vector<1x1xf32> to vector<1x128xf32>
    %58 = arith.addf %56, %57 : vector<1x128xf32>
    %c0_41 = arith.constant 0 : index
    %c0_42 = arith.constant 0 : index
    %c0_43 = arith.constant 0 : index
    %59 = vector.load %arg4[%c0_41, %c0_42, %c0_43] : memref<1x1x128xf32, #tpu.memory_space<vmem>>, vector<1x1x128xf32>
    %60 = vector.shape_cast %59 : vector<1x1x128xf32> to vector<1x128xf32>
    %61 = vector.shape_cast %58 : vector<1x128xf32> to vector<1x1x128xf32>
    tpu.vector_store %arg4[%c0_41, %c0_42, %c0_43], %61 {strides = array<i32>} : memref<1x1x128xf32, #tpu.memory_space<vmem>>, vector<1x1x128xf32>,
    return
  }
  func.func @transform_0(%arg0: i32) -> (i32, i32) {
    %c0_i32 = arith.constant 0 : i32
    %c0_i32_0 = arith.constant 0 : i32
    return %arg0, %c0_i32 : i32, i32
  }
  func.func @transform_1(%arg0: i32) -> (i32, i32, i32) {
    %c0_i32 = arith.constant 0 : i32
    %c0_i32_0 = arith.constant 0 : i32
    %c0_i32_1 = arith.constant 0 : i32
    %c0_i32_2 = arith.constant 0 : i32
    return %c0_i32, %c0_i32_0, %c0_i32_1 : i32, i32, i32
  }
  func.func @transform_2(%arg0: i32) -> (i32, i32) {
    %c0_i32 = arith.constant 0 : i32
    %c0_i32_0 = arith.constant 0 : i32
    %c0_i32_1 = arith.constant 0 : i32
    return %c0_i32, %c0_i32_0 : i32, i32
  }
  func.func @transform_3(%arg0: i32) -> (i32, i32, i32) {
    %c0_i32 = arith.constant 0 : i32
    %c0_i32_0 = arith.constant 0 : i32
    %c0_i32_1 = arith.constant 0 : i32
    return %arg0, %c0_i32, %c0_i32_0 : i32, i32, i32
  }
}

</mosaic_0001>

<llo_original>
// kernel: tpu_custom_call.1
$region0: #{tpu_custom_call.1}
  #allocation0 [shape = 'u32[]', space=smem, size = 0x4, offset = 0x4, fixed_abs, tag = 'smem constant byte address 0x4 - core index']
  #allocation1 [shape = 'u32[144,128]{1,0:T(1,128)}', space=vmem, size = 0x12000, scoped, tag = 'internal scratch']
  #allocation2 [shape = 'bf16[128,32]{1,0:T(16,128)(2,1)}', space=vmem, size = 0x8000, scoped, tag = 'scratch operand']
  %s0 = inlined_call_operand.vmem [shape: f32[128,24], index: 0, kind: input, shape index: {}]
  %s1 = inlined_call_operand.hbm [shape: bf16[5,128,128], index: 1, kind: input, shape index: {}]
  %s2 = inlined_call_operand.vmem [shape: f32[7,128], index: 2, kind: input, shape index: {}]
  %s3 = inlined_call_operand.hbm [shape: f32[1,1,128], index: 3, kind: output, shape index: {}]
  %s4 = sld [smem:[#allocation0]]
  $region26: #{tpu_custom_call.1} parent=0
    _
  %s6 = ssub.s32 1, %s4
  %s7 = scalar_select 0, %s6, %s4
  $region1: #{tpu_custom_call.1} parent=0
    #allocation3 [shape = 'u8[163840]{0}', space=vmem, size = 0x28000, scoped, tag = 'input window, operand 1, single buffered']
    #allocation4 [shape = 's32[1]{0}', space=sflag, size = 0x4, scoped, tag = 'scoped memory for tpu_custom_call.1']
    #allocation5 [shape = 's32[1]{0}', space=sflag, size = 0x4, scoped, tag = 'scoped memory for tpu_custom_call.1']
    #allocation6 [shape = 'u8[512]{0}', space=vmem, size = 0x400, scoped, tag = 'output window, operand 0, single buffered']
    %8 = vsyncpa [#allocation4], 0
    %9 = vsyncpa [#allocation5], 0
    // Predicated region
    $region2: #{tpu_custom_call.1} parent=1 // pred_check
      _
    $region3: #{tpu_custom_call.1} parent=1 // pred_check_branch
      %11 = sbr.rel (0) target = $region5
    $region4: #{tpu_custom_call.1} parent=1 // pred_region
      _
    $region5: #{tpu_custom_call.1} parent=1 // pred_fallthru
      _
    // Predicated region
    $region6: #{tpu_custom_call.1} parent=1 // pred_check
      _
    $region7: #{tpu_custom_call.1} parent=1 // pred_check_branch
      %13 = sbr.rel (0) target = $region9
    $region8: #{tpu_custom_call.1} parent=1 // pred_region
      %s15 = ssub.s32 5120, 5120
      %16 = vsyncadd [#allocation4], %s15
      %s17 = sshll.u32 [#allocation3], 4
      %s18 = int_to_ptr.vmem [resolvable:$true] %s17
      %23 = dma.hbm_to_vmem [thread:$0]  %s1, 5120, %s18, [#allocation4], 64, 64, 4
    $region9: #{tpu_custom_call.1} parent=1 // pred_fallthru
      _
    // Predicated region
    $region10: #{tpu_custom_call.1} parent=1 // pred_check
      _
    $region11: #{tpu_custom_call.1} parent=1 // pred_check_branch
      %25 = sbr.rel (0) target = $region13
    $region12: #{tpu_custom_call.1} parent=1 // pred_region
      _
    $region13: #{tpu_custom_call.1} parent=1 // pred_fallthru
      _
    // Predicated region
    $region14: #{tpu_custom_call.1} parent=1 // pred_check
      _
    $region15: #{tpu_custom_call.1} parent=1 // pred_check_branch
      %27 = sbr.rel (0) target = $region17
    $region16: #{tpu_custom_call.1} parent=1 // pred_region
      %28 = dma.done [#allocation4], 5120
    $region17: #{tpu_custom_call.1} parent=1 // pred_fallthru
      _
    %vm30 = vcmask 261120
    %31 = vst.msk [vmem:[#allocation2] sm:$0xff] %vm30, 0
    %32 = vst.msk [vmem:[#allocation2 + $0x8] sm:$0xff] %vm30, 0
    %33 = vst.msk [vmem:[#allocation2 + $0x10] sm:$0xff] %vm30, 0
    %34 = vst.msk [vmem:[#allocation2 + $0x18] sm:$0xff] %vm30, 0
    %35 = vst.msk [vmem:[#allocation2 + $0x20] sm:$0xff] %vm30, 0
    %36 = vst.msk [vmem:[#allocation2 + $0x28] sm:$0xff] %vm30, 0
    %37 = vst.msk [vmem:[#allocation2 + $0x30] sm:$0xff] %vm30, 0
    %38 = vst.msk [vmem:[#allocation2 + $0x38] sm:$0xff] %vm30, 0
    %v39 = vld [vmem:[%s0] sm:$0xff]
    %v40 = vld [vmem:[%s0 + $0x8] sm:$0xff]
    %v41 = vld [vmem:[%s0 + $0x10] sm:$0xff]
    %v42 = vld [vmem:[%s0 + $0x18] sm:$0xff]
    %v43 = vld [vmem:[%s0 + $0x20] sm:$0xff]
    %v44 = vld [vmem:[%s0 + $0x28] sm:$0xff]
    %v45 = vld [vmem:[%s0 + $0x30] sm:$0xff]
    %v46 = vld [vmem:[%s0 + $0x38] sm:$0xff]
    %v47 = vld [vmem:[%s0 + $0x40] sm:$0xff]
    %v48 = vld [vmem:[%s0 + $0x48] sm:$0xff]
    %v49 = vld [vmem:[%s0 + $0x50] sm:$0xff]
    %v50 = vld [vmem:[%s0 + $0x58] sm:$0xff]
    %v51 = vld [vmem:[%s0 + $0x60] sm:$0xff]
    %v52 = vld [vmem:[%s0 + $0x68] sm:$0xff]
    %v53 = vld [vmem:[%s0 + $0x70] sm:$0xff]
    %v54 = vld [vmem:[%s0 + $0x78] sm:$0xff]
    %v55 = vpack.c.bf16 %v40, %v39
    %v56 = vpack.c.bf16 %v42, %v41
    %v57 = vpack.c.bf16 %v44, %v43
    %v58 = vpack.c.bf16 %v46, %v45
    %v59 = vpack.c.bf16 %v48, %v47
    %v60 = vpack.c.bf16 %v50, %v49
    %v61 = vpack.c.bf16 %v52, %v51
    %v62 = vpack.c.bf16 %v54, %v53
    %vm63 = vcmask 195584
    %64 = vst.msk [vmem:[#allocation2] sm:$0xff] %vm63, %v55
    %65 = vst.msk [vmem:[#allocation2 + $0x8] sm:$0xff] %vm63, %v56
    %66 = vst.msk [vmem:[#allocation2 + $0x10] sm:$0xff] %vm63, %v57
    %67 = vst.msk [vmem:[#allocation2 + $0x18] sm:$0xff] %vm63, %v58
    %68 = vst.msk [vmem:[#allocation2 + $0x20] sm:$0xff] %vm63, %v59
    %69 = vst.msk [vmem:[#allocation2 + $0x28] sm:$0xff] %vm63, %v60
    %70 = vst.msk [vmem:[#allocation2 + $0x30] sm:$0xff] %vm63, %v61
    %71 = vst.msk [vmem:[#allocation2 + $0x38] sm:$0xff] %vm63, %v62
    %v72 = vld [vmem:[#allocation2] sm:$0xff]
    %v73 = vld [vmem:[#allocation2 + $0x8] sm:$0xff]
    %v74 = vld [vmem:[#allocation2 + $0x10] sm:$0xff]
    %v75 = vld [vmem:[#allocation2 + $0x18] sm:$0xff]
    %v76 = vld [vmem:[#allocation2 + $0x20] sm:$0xff]
    %v77 = vld [vmem:[#allocation2 + $0x28] sm:$0xff]
    %v78 = vld [vmem:[#allocation2 + $0x30] sm:$0xff]
    %v79 = vld [vmem:[#allocation2 + $0x38] sm:$0xff]
    %v80 = vld [vmem:[#allocation3] sm:$0xf]
    %v81 = vld [vmem:[#allocation3 + $0x4] sm:$0xf]
    %v82 = vld [vmem:[#allocation3 + $0x8] sm:$0xf]
    %v83 = vld [vmem:[#allocation3 + $0xc] sm:$0xf]
    %v84 = vld [vmem:[%s2] sm:$0x1]
    %v85 = vlaneseq
    %v86 = vshrl.u32 %v85, 7
    %v87 = vsub.s32 0, %v86
    %v88 = vrot.slane %v84, %v87
    %v93 = vunpack.c.l.b16 %v80
    %v94 = vunpack.c.l.b16 %v81
    %v95 = vunpack.c.l.b16 %v82
    %v96 = vunpack.c.l.b16 %v83
    %v97 = vpack.c.b16 %v94, %v93
    %v98 = vpack.c.b16 %v96, %v95
    %v102 = vsel %vm30, %v72, 0
    %v105 = vsel %vm30, %v73, 0
    %v108 = vsel %vm30, %v74, 0
    %v111 = vsel %vm30, %v75, 0
    %v114 = vsel %vm30, %v76, 0
    %v117 = vsel %vm30, %v77, 0
    %v120 = vsel %vm30, %v78, 0
    %v123 = vsel %vm30, %v79, 0
    %125 = vmatprep.subr.bf16.mxu0 0
    %126 = vmatpush1.bf16.msra.mxu0 %v97
    %127 = vmatprep.subr.bf16.mxu0 0
    %128 = vmatpush1.bf16.msra.mxu0 %v98
    %129 = vmatprep.subr.bf16.mxu0 0
    %130 = vmatpush1.bf16.msra.mxu0 0
    %131 = vmatprep.subr.bf16.mxu0 0
    %132 = vmatpush1.bf16.msra.mxu0 0
    %133 = vmatprep.subr.bf16.mxu0 0
    %134 = vmatpush1.bf16.msra.mxu0 0
    %135 = vmatprep.subr.bf16.mxu0 0
    %136 = vmatpush1.bf16.msra.mxu0 0
    %137 = vmatprep.subr.bf16.mxu0 0
    %138 = vmatpush1.bf16.msra.mxu0 0
    %139 = vmatprep.subr.bf16.mxu0 0
    %140 = vmatpush1.bf16.msra.mxu0 0
    %141 = vmatprep.subr.bf16.mxu0 0
    %142 = vmatpush1.bf16.msra.mxu0 0
    %143 = vmatprep.subr.bf16.mxu0 0
    %144 = vmatpush1.bf16.msra.mxu0 0
    %145 = vmatprep.subr.bf16.mxu0 0
    %146 = vmatpush1.bf16.msra.mxu0 0
    %147 = vmatprep.subr.bf16.mxu0 0
    %148 = vmatpush1.bf16.msra.mxu0 0
    %149 = vmatprep.subr.bf16.mxu0 0
    %150 = vmatpush1.bf16.msra.mxu0 0
    %151 = vmatprep.subr.bf16.mxu0 0
    %152 = vmatpush1.bf16.msra.mxu0 0
    %153 = vmatprep.subr.bf16.mxu0 0
    %154 = vmatpush1.bf16.msra.mxu0 0
    %155 = vmatprep.subr.bf16.mxu0 0
    %156 = vmatpush1.bf16.msra.mxu0 0
    %157 = vmatprep.mubr.bf16.mxu0 0
    %158 = vmatmul.mubr.bf16.gmra.mrb[0].mxu0 %v102
    %v159 = vpop.f32.mrb[0].mxu0
    %v160 = vadd.f32 %v88, %v159
    %v161 = vpop.f32.mrb[0].mxu0
    %v162 = vpop.f32.mrb[0].mxu0
    %v163 = vadd.f32 %v88, %v162
    %v164 = vpop.f32.mrb[0].mxu0
    %165 = vmatprep.mubr.bf16.mxu0 0
    %166 = vmatmul.mubr.bf16.gmra.mrb[0].mxu0 %v105
    %v167 = vpop.f32.mrb[0].mxu0
    %v168 = vadd.f32 %v88, %v167
    %v169 = vpop.f32.mrb[0].mxu0
    %v170 = vpop.f32.mrb[0].mxu0
    %v171 = vadd.f32 %v88, %v170
    %v172 = vpop.f32.mrb[0].mxu0
    %173 = vmatprep.mubr.bf16.mxu0 0
    %174 = vmatmul.mubr.bf16.gmra.mrb[0].mxu0 %v108
    %v175 = vpop.f32.mrb[0].mxu0
    %v176 = vadd.f32 %v88, %v175
    %v177 = vpop.f32.mrb[0].mxu0
    %v178 = vpop.f32.mrb[0].mxu0
    %v179 = vadd.f32 %v88, %v178
    %v180 = vpop.f32.mrb[0].mxu0
    %181 = vmatprep.mubr.bf16.mxu0 0
    %182 = vmatmul.mubr.bf16.gmra.mrb[0].mxu0 %v111
    %v183 = vpop.f32.mrb[0].mxu0
    %v184 = vadd.f32 %v88, %v183
    %v185 = vpop.f32.mrb[0].mxu0
    %v186 = vpop.f32.mrb[0].mxu0
    %v187 = vadd.f32 %v88, %v186
    %v188 = vpop.f32.mrb[0].mxu0
    %189 = vmatprep.mubr.bf16.mxu0 0
    %190 = vmatmul.mubr.bf16.gmra.mrb[0].mxu0 %v114
    %v191 = vpop.f32.mrb[0].mxu0
    %v192 = vadd.f32 %v88, %v191
    %v193 = vpop.f32.mrb[0].mxu0
    %v194 = vpop.f32.mrb[0].mxu0
    %v195 = vadd.f32 %v88, %v194
    %v196 = vpop.f32.mrb[0].mxu0
    %197 = vmatprep.mubr.bf16.mxu0 0
    %198 = vmatmul.mubr.bf16.gmra.mrb[0].mxu0 %v117
    %v199 = vpop.f32.mrb[0].mxu0
    %v200 = vadd.f32 %v88, %v199
    %v201 = vpop.f32.mrb[0].mxu0
    %v202 = vpop.f32.mrb[0].mxu0
    %v203 = vadd.f32 %v88, %v202
    %v204 = vpop.f32.mrb[0].mxu0
    %205 = vmatprep.mubr.bf16.mxu0 0
    %206 = vmatmul.mubr.bf16.gmra.mrb[0].mxu0 %v120
    %v207 = vpop.f32.mrb[0].mxu0
    %v208 = vadd.f32 %v88, %v207
    %v209 = vpop.f32.mrb[0].mxu0
    %v210 = vpop.f32.mrb[0].mxu0
    %v211 = vadd.f32 %v88, %v210
    %v212 = vpop.f32.mrb[0].mxu0
    %213 = vmatprep.mubr.bf16.mxu0 0
    %214 = vmatmul.mubr.bf16.gmra.mrb[0].mxu0 %v123
    %v215 = vpop.f32.mrb[0].mxu0
    %v216 = vadd.f32 %v88, %v215
    %v217 = vpop.f32.mrb[0].mxu0
    %v218 = vpop.f32.mrb[0].mxu0
    %v219 = vadd.f32 %v88, %v218
    %v220 = vpop.f32.mrb[0].mxu0
    %221 = vdwg.mxu0
    %v222 = vmax.f32 %v160, 0.0
    %v223 = vmax.f32 %v163, 0.0
    %v224 = vmax.f32 %v168, 0.0
    %v225 = vmax.f32 %v171, 0.0
    %v226 = vmax.f32 %v176, 0.0
    %v227 = vmax.f32 %v179, 0.0
    %v228 = vmax.f32 %v184, 0.0
    %v229 = vmax.f32 %v187, 0.0
    %v230 = vmax.f32 %v192, 0.0
    %v231 = vmax.f32 %v195, 0.0
    %v232 = vmax.f32 %v200, 0.0
    %v233 = vmax.f32 %v203, 0.0
    %v234 = vmax.f32 %v208, 0.0
    %v235 = vmax.f32 %v211, 0.0
    %v236 = vmax.f32 %v216, 0.0
    %v237 = vmax.f32 %v219, 0.0
    %s238 = scalar_lea.vmem [#allocation3], 64
    %v239 = vld [vmem:[%s238] sm:$0xf]
    %v240 = vld [vmem:[%s238 + $0x4] sm:$0xf]
    %v241 = vld [vmem:[%s238 + $0x8] sm:$0xf]
    %v242 = vld [vmem:[%s238 + $0xc] sm:$0xf]
    %v243 = vld [vmem:[%s238 + $0x10] sm:$0xf]
    %v244 = vld [vmem:[%s238 + $0x14] sm:$0xf]
    %v245 = vld [vmem:[%s238 + $0x18] sm:$0xf]
    %v246 = vld [vmem:[%s238 + $0x1c] sm:$0xf]
    %v247 = vld [vmem:[%s238 + $0x20] sm:$0xf]
    %v248 = vld [vmem:[%s238 + $0x24] sm:$0xf]
    %v249 = vld [vmem:[%s238 + $0x28] sm:$0xf]
    %v250 = vld [vmem:[%s238 + $0x2c] sm:$0xf]
    %v251 = vld [vmem:[%s238 + $0x30] sm:$0xf]
    %v252 = vld [vmem:[%s238 + $0x34] sm:$0xf]
    %v253 = vld [vmem:[%s238 + $0x38] sm:$0xf]
    %v254 = vld [vmem:[%s238 + $0x3c] sm:$0xf]
    %s255 = scalar_lea.vmem [#allocation3], 128
    %v256 = vld [vmem:[%s255] sm:$0xf]
    %v257 = vld [vmem:[%s255 + $0x4] sm:$0xf]
    %v258 = vld [vmem:[%s255 + $0x8] sm:$0xf]
    %v259 = vld [vmem:[%s255 + $0xc] sm:$0xf]
    %v260 = vld [vmem:[%s255 + $0x10] sm:$0xf]
    %v261 = vld [vmem:[%s255 + $0x14] sm:$0xf]
    %v262 = vld [vmem:[%s255 + $0x18] sm:$0xf]
    %v263 = vld [vmem:[%s255 + $0x1c] sm:$0xf]
    %v264 = vld [vmem:[%s255 + $0x20] sm:$0xf]
    %v265 = vld [vmem:[%s255 + $0x24] sm:$0xf]
    %v266 = vld [vmem:[%s255 + $0x28] sm:$0xf]
    %v267 = vld [vmem:[%s255 + $0x2c] sm:$0xf]
    %v268 = vld [vmem:[%s255 + $0x30] sm:$0xf]
    %v269 = vld [vmem:[%s255 + $0x34] sm:$0xf]
    %v270 = vld [vmem:[%s255 + $0x38] sm:$0xf]
    %v271 = vld [vmem:[%s255 + $0x3c] sm:$0xf]
    %v272 = vld [vmem:[%s2 + $0x1] sm:$0x1]
    %v273 = vld [vmem:[%s2 + $0x2] sm:$0x1]
    %v274 = vpack.c.bf16 %v223, %v222
    %v275 = vpack.c.bf16 %v225, %v224
    %v276 = vpack.c.bf16 %v227, %v226
    %v277 = vpack.c.bf16 %v229, %v228
    %v278 = vpack.c.bf16 %v231, %v230
    %v279 = vpack.c.bf16 %v233, %v232
    %v280 = vpack.c.bf16 %v235, %v234
    %v281 = vpack.c.bf16 %v237, %v236
    %v282 = vlaneseq
    %v283 = vshrl.u32 %v282, 7
    %v284 = vsub.s32 0, %v283
    %v285 = vrot.slane %v272, %v284
    %v302 = vunpack.c.l.b16 %v239
    %v303 = vunpack.c.l.b16 %v240
    %v304 = vunpack.c.l.b16 %v241
    %v305 = vunpack.c.l.b16 %v242
    %v306 = vunpack.c.l.b16 %v243
    %v307 = vunpack.c.l.b16 %v244
    %v308 = vunpack.c.l.b16 %v245
    %v309 = vunpack.c.l.b16 %v246
    %v310 = vunpack.c.l.b16 %v247
    %v311 = vunpack.c.l.b16 %v248
    %v312 = vunpack.c.l.b16 %v249
    %v313 = vunpack.c.l.b16 %v250
    %v314 = vunpack.c.l.b16 %v251
    %v315 = vunpack.c.l.b16 %v252
    %v316 = vunpack.c.l.b16 %v253
    %v317 = vunpack.c.l.b16 %v254
    %v318 = vpack.c.b16 %v303, %v302
    %v319 = vpack.c.b16 %v305, %v304
    %v320 = vpack.c.b16 %v307, %v306
    %v321 = vpack.c.b16 %v309, %v308
    %v322 = vpack.c.b16 %v311, %v310
    %v323 = vpack.c.b16 %v313, %v312
    %v324 = vpack.c.b16 %v315, %v314
    %v325 = vpack.c.b16 %v317, %v316
    %334 = vmatprep.subr.bf16.mxu0 0
    %335 = vmatpush1.bf16.msra.mxu0 %v318
    %336 = vmatprep.subr.bf16.mxu0 0
    %337 = vmatpush1.bf16.msra.mxu0 %v319
    %338 = vmatprep.subr.bf16.mxu0 0
    %339 = vmatpush1.bf16.msra.mxu0 %v320
    %340 = vmatprep.subr.bf16.mxu0 0
    %341 = vmatpush1.bf16.msra.mxu0 %v321
    %342 = vmatprep.subr.bf16.mxu0 0
    %343 = vmatpush1.bf16.msra.mxu0 %v322
    %344 = vmatprep.subr.bf16.mxu0 0
    %345 = vmatpush1.bf16.msra.mxu0 %v323
    %346 = vmatprep.subr.bf16.mxu0 0
    %347 = vmatpush1.bf16.msra.mxu0 %v324
    %348 = vmatprep.subr.bf16.mxu0 0
    %349 = vmatpush1.bf16.msra.mxu0 %v325
    %350 = vmatprep.subr.bf16.mxu0 0
    %351 = vmatpush1.bf16.msra.mxu0 0
    %352 = vmatprep.subr.bf16.mxu0 0
    %353 = vmatpush1.bf16.msra.mxu0 0
    %354 = vmatprep.subr.bf16.mxu0 0
    %355 = vmatpush1.bf16.msra.mxu0 0
    %356 = vmatprep.subr.bf16.mxu0 0
    %357 = vmatpush1.bf16.msra.mxu0 0
    %358 = vmatprep.subr.bf16.mxu0 0
    %359 = vmatpush1.bf16.msra.mxu0 0
    %360 = vmatprep.subr.bf16.mxu0 0
    %361 = vmatpush1.bf16.msra.mxu0 0
    %362 = vmatprep.subr.bf16.mxu0 0
    %363 = vmatpush1.bf16.msra.mxu0 0
    %364 = vmatprep.subr.bf16.mxu0 0
    %365 = vmatpush1.bf16.msra.mxu0 0
    %366 = vmatprep.mubr.bf16.mxu0 0
    %367 = vmatmul.mubr.bf16.gmra.mrb[0].mxu0 %v274
    %v368 = vpop.f32.mrb[0].mxu0
    %v369 = vadd.f32 %v285, %v368
    %v370 = vpop.f32.mrb[0].mxu0
    %v371 = vpop.f32.mrb[0].mxu0
    %v372 = vadd.f32 %v285, %v371
    %v373 = vpop.f32.mrb[0].mxu0
    %374 = vmatprep.mubr.bf16.mxu0 0
    %375 = vmatmul.mubr.bf16.gmra.mrb[0].mxu0 %v275
    %v376 = vpop.f32.mrb[0].mxu0
    %v377 = vadd.f32 %v285, %v376
    %v378 = vpop.f32.mrb[0].mxu0
    %v379 = vpop.f32.mrb[0].mxu0
    %v380 = vadd.f32 %v285, %v379
    %v381 = vpop.f32.mrb[0].mxu0
    %382 = vmatprep.mubr.bf16.mxu0 0
    %383 = vmatmul.mubr.bf16.gmra.mrb[0].mxu0 %v276
    %v384 = vpop.f32.mrb[0].mxu0
    %v385 = vadd.f32 %v285, %v384
    %v386 = vpop.f32.mrb[0].mxu0
    %v387 = vpop.f32.mrb[0].mxu0
    %v388 = vadd.f32 %v285, %v387
    %v389 = vpop.f32.mrb[0].mxu0
    %390 = vmatprep.mubr.bf16.mxu0 0
    %391 = vmatmul.mubr.bf16.gmra.mrb[0].mxu0 %v277
    %v392 = vpop.f32.mrb[0].mxu0
    %v393 = vadd.f32 %v285, %v392
    %v394 = vpop.f32.mrb[0].mxu0
    %v395 = vpop.f32.mrb[0].mxu0
    %v396 = vadd.f32 %v285, %v395
    %v397 = vpop.f32.mrb[0].mxu0
    %398 = vmatprep.mubr.bf16.mxu0 0
    %399 = vmatmul.mubr.bf16.gmra.mrb[0].mxu0 %v278
    %v400 = vpop.f32.mrb[0].mxu0
    %v401 = vadd.f32 %v285, %v400
    %v402 = vpop.f32.mrb[0].mxu0
    %v403 = vpop.f32.mrb[0].mxu0
    %v404 = vadd.f32 %v285, %v403
    %v405 = vpop.f32.mrb[0].mxu0
    %406 = vmatprep.mubr.bf16.mxu0 0
    %407 = vmatmul.mubr.bf16.gmra.mrb[0].mxu0 %v279
    %v408 = vpop.f32.mrb[0].mxu0
    %v409 = vadd.f32 %v285, %v408
    %v410 = vpop.f32.mrb[0].mxu0
    %v411 = vpop.f32.mrb[0].mxu0
    %v412 = vadd.f32 %v285, %v411
    %v413 = vpop.f32.mrb[0].mxu0
    %414 = vmatprep.mubr.bf16.mxu0 0
    %415 = vmatmul.mubr.bf16.gmra.mrb[0].mxu0 %v280
    %v416 = vpop.f32.mrb[0].mxu0
    %v417 = vadd.f32 %v285, %v416
    %v418 = vpop.f32.mrb[0].mxu0
    %v419 = vpop.f32.mrb[0].mxu0
    %v420 = vadd.f32 %v285, %v419
    %v421 = vpop.f32.mrb[0].mxu0
    %422 = vmatprep.mubr.bf16.mxu0 0
    %423 = vmatmul.mubr.bf16.gmra.mrb[0].mxu0 %v281
    %v424 = vpop.f32.mrb[0].mxu0
    %v425 = vadd.f32 %v285, %v424
    %v426 = vpop.f32.mrb[0].mxu0
    %v427 = vpop.f32.mrb[0].mxu0
    %v428 = vadd.f32 %v285, %v427
    %v429 = vpop.f32.mrb[0].mxu0
    %430 = vdwg.mxu0
    %v431 = vmax.f32 %v369, 0.0
    %v432 = vmax.f32 %v372, 0.0
    %v433 = vmax.f32 %v377, 0.0
    %v434 = vmax.f32 %v380, 0.0
    %v435 = vmax.f32 %v385, 0.0
    %v436 = vmax.f32 %v388, 0.0
    %v437 = vmax.f32 %v393, 0.0
    %v438 = vmax.f32 %v396, 0.0
    %v439 = vmax.f32 %v401, 0.0
    %v440 = vmax.f32 %v404, 0.0
    %v441 = vmax.f32 %v409, 0.0
    %v442 = vmax.f32 %v412, 0.0
    %v443 = vmax.f32 %v417, 0.0
    %v444 = vmax.f32 %v420, 0.0
    %v445 = vmax.f32 %v425, 0.0
    %v446 = vmax.f32 %v428, 0.0
    %v447 = vpack.c.bf16 %v432, %v431
    %v448 = vpack.c.bf16 %v434, %v433
    %v449 = vpack.c.bf16 %v436, %v435
    %v450 = vpack.c.bf16 %v438, %v437
    %v451 = vpack.c.bf16 %v440, %v439
    %v452 = vpack.c.bf16 %v442, %v441
    %v453 = vpack.c.bf16 %v444, %v443
    %v454 = vpack.c.bf16 %v446, %v445
    %v455 = vlaneseq
    %v456 = vshrl.u32 %v455, 7
    %v457 = vsub.s32 0, %v456
    %v458 = vrot.slane %v273, %v457
    %v475 = vunpack.c.l.b16 %v256
    %v476 = vunpack.c.l.b16 %v257
    %v477 = vunpack.c.l.b16 %v258
    %v478 = vunpack.c.l.b16 %v259
    %v479 = vunpack.c.l.b16 %v260
    %v480 = vunpack.c.l.b16 %v261
    %v481 = vunpack.c.l.b16 %v262
    %v482 = vunpack.c.l.b16 %v263
    %v483 = vunpack.c.l.b16 %v264
    %v484 = vunpack.c.l.b16 %v265
    %v485 = vunpack.c.l.b16 %v266
    %v486 = vunpack.c.l.b16 %v267
    %v487 = vunpack.c.l.b16 %v268
    %v488 = vunpack.c.l.b16 %v269
    %v489 = vunpack.c.l.b16 %v270
    %v490 = vunpack.c.l.b16 %v271
    %v491 = vpack.c.b16 %v476, %v475
    %v492 = vpack.c.b16 %v478, %v477
    %v493 = vpack.c.b16 %v480, %v479
    %v494 = vpack.c.b16 %v482, %v481
    %v495 = vpack.c.b16 %v484, %v483
    %v496 = vpack.c.b16 %v486, %v485
    %v497 = vpack.c.b16 %v488, %v487
    %v498 = vpack.c.b16 %v490, %v489
    %507 = vmatprep.subr.bf16.mxu0 0
    %508 = vmatpush1.bf16.msra.mxu0 %v491
    %509 = vmatprep.subr.bf16.mxu0 0
    %510 = vmatpush1.bf16.msra.mxu0 %v492
    %511 = vmatprep.subr.bf16.mxu0 0
    %512 = vmatpush1.bf16.msra.mxu0 %v493
    %513 = vmatprep.subr.bf16.mxu0 0
    %514 = vmatpush1.bf16.msra.mxu0 %v494
    %515 = vmatprep.subr.bf16.mxu0 0
    %516 = vmatpush1.bf16.msra.mxu0 %v495
    %517 = vmatprep.subr.bf16.mxu0 0
    %518 = vmatpush1.bf16.msra.mxu0 %v496
    %519 = vmatprep.subr.bf16.mxu0 0
    %520 = vmatpush1.bf16.msra.mxu0 %v497
    %521 = vmatprep.subr.bf16.mxu0 0
    %522 = vmatpush1.bf16.msra.mxu0 %v498
    %523 = vmatprep.subr.bf16.mxu0 0
    %524 = vmatpush1.bf16.msra.mxu0 0
    %525 = vmatprep.subr.bf16.mxu0 0
    %526 = vmatpush1.bf16.msra.mxu0 0
    %527 = vmatprep.subr.bf16.mxu0 0
    %528 = vmatpush1.bf16.msra.mxu0 0
    %529 = vmatprep.subr.bf16.mxu0 0
    %530 = vmatpush1.bf16.msra.mxu0 0
    %531 = vmatprep.subr.bf16.mxu0 0
    %532 = vmatpush1.bf16.msra.mxu0 0
    %533 = vmatprep.subr.bf16.mxu0 0
    %534 = vmatpush1.bf16.msra.mxu0 0
    %535 = vmatprep.subr.bf16.mxu0 0
    %536 = vmatpush1.bf16.msra.mxu0 0
    %537 = vmatprep.subr.bf16.mxu0 0
    %538 = vmatpush1.bf16.msra.mxu0 0
    %539 = vmatprep.mubr.bf16.mxu0 0
    %540 = vmatmul.mubr.bf16.gmra.mrb[0].mxu0 %v447
    %v541 = vpop.f32.mrb[0].mxu0
    %v542 = vadd.f32 %v458, %v541
    %v543 = vpop.f32.mrb[0].mxu0
    %v544 = vpop.f32.mrb[0].mxu0
    %v545 = vadd.f32 %v458, %v544
    %v546 = vpop.f32.mrb[0].mxu0
    %547 = vmatprep.mubr.bf16.mxu0 0
    %548 = vmatmul.mubr.bf16.gmra.mrb[0].mxu0 %v448
    %v549 = vpop.f32.mrb[0].mxu0
    %v550 = vadd.f32 %v458, %v549
    %v551 = vpop.f32.mrb[0].mxu0
    %v552 = vpop.f32.mrb[0].mxu0
    %v553 = vadd.f32 %v458, %v552
    %v554 = vpop.f32.mrb[0].mxu0
    %555 = vmatprep.mubr.bf16.mxu0 0
    %556 = vmatmul.mubr.bf16.gmra.mrb[0].mxu0 %v449
    %v557 = vpop.f32.mrb[0].mxu0
    %v558 = vadd.f32 %v458, %v557
    %v559 = vpop.f32.mrb[0].mxu0
    %v560 = vpop.f32.mrb[0].mxu0
    %v561 = vadd.f32 %v458, %v560
    %v562 = vpop.f32.mrb[0].mxu0
    %563 = vmatprep.mubr.bf16.mxu0 0
    %564 = vmatmul.mubr.bf16.gmra.mrb[0].mxu0 %v450
    %v565 = vpop.f32.mrb[0].mxu0
    %v566 = vadd.f32 %v458, %v565
    %v567 = vpop.f32.mrb[0].mxu0
    %v568 = vpop.f32.mrb[0].mxu0
    %v569 = vadd.f32 %v458, %v568
    %v570 = vpop.f32.mrb[0].mxu0
    %571 = vmatprep.mubr.bf16.mxu0 0
    %572 = vmatmul.mubr.bf16.gmra.mrb[0].mxu0 %v451
    %v573 = vpop.f32.mrb[0].mxu0
    %v574 = vadd.f32 %v458, %v573
    %v575 = vpop.f32.mrb[0].mxu0
    %v576 = vpop.f32.mrb[0].mxu0
    %v577 = vadd.f32 %v458, %v576
    %v578 = vpop.f32.mrb[0].mxu0
    %579 = vmatprep.mubr.bf16.mxu0 0
    %580 = vmatmul.mubr.bf16.gmra.mrb[0].mxu0 %v452
    %v581 = vpop.f32.mrb[0].mxu0
    %v582 = vadd.f32 %v458, %v581
    %v583 = vpop.f32.mrb[0].mxu0
    %v584 = vpop.f32.mrb[0].mxu0
    %v585 = vadd.f32 %v458, %v584
    %v586 = vpop.f32.mrb[0].mxu0
    %587 = vmatprep.mubr.bf16.mxu0 0
    %588 = vmatmul.mubr.bf16.gmra.mrb[0].mxu0 %v453
    %v589 = vpop.f32.mrb[0].mxu0
    %v590 = vadd.f32 %v458, %v589
    %v591 = vpop.f32.mrb[0].mxu0
    %v592 = vpop.f32.mrb[0].mxu0
    %v593 = vadd.f32 %v458, %v592
    %v594 = vpop.f32.mrb[0].mxu0
    %595 = vmatprep.mubr.bf16.mxu0 0
    %596 = vmatmul.mubr.bf16.gmra.mrb[0].mxu0 %v454
    %v597 = vpop.f32.mrb[0].mxu0
    %v598 = vadd.f32 %v458, %v597
    %v599 = vpop.f32.mrb[0].mxu0
    %v600 = vpop.f32.mrb[0].mxu0
    %v601 = vadd.f32 %v458, %v600
    %v602 = vpop.f32.mrb[0].mxu0
    %603 = vdwg.mxu0
    %v604 = vadd.f32 %v222, %v542
    %v605 = vadd.f32 %v223, %v545
    %v606 = vadd.f32 %v224, %v550
    %v607 = vadd.f32 %v225, %v553
    %v608 = vadd.f32 %v226, %v558
    %v609 = vadd.f32 %v227, %v561
    %v610 = vadd.f32 %v228, %v566
    %v611 = vadd.f32 %v229, %v569
    %v612 = vadd.f32 %v230, %v574
    %v613 = vadd.f32 %v231, %v577
    %v614 = vadd.f32 %v232, %v582
    %v615 = vadd.f32 %v233, %v585
    %v616 = vadd.f32 %v234, %v590
    %v617 = vadd.f32 %v235, %v593
    %v618 = vadd.f32 %v236, %v598
    %v619 = vadd.f32 %v237, %v601
    %v620 = vmax.f32 %v604, 0.0
    %v621 = vmax.f32 %v605, 0.0
    %v622 = vmax.f32 %v606, 0.0
    %v623 = vmax.f32 %v607, 0.0
    %v624 = vmax.f32 %v608, 0.0
    %v625 = vmax.f32 %v609, 0.0
    %v626 = vmax.f32 %v610, 0.0
    %v627 = vmax.f32 %v611, 0.0
    %v628 = vmax.f32 %v612, 0.0
    %v629 = vmax.f32 %v613, 0.0
    %v630 = vmax.f32 %v614, 0.0
    %v631 = vmax.f32 %v615, 0.0
    %v632 = vmax.f32 %v616, 0.0
    %v633 = vmax.f32 %v617, 0.0
    %v634 = vmax.f32 %v618, 0.0
    %v635 = vmax.f32 %v619, 0.0
    %s636 = scalar_lea.vmem [#allocation3], 192
    %v637 = vld [vmem:[%s636] sm:$0xf]
    %v638 = vld [vmem:[%s636 + $0x4] sm:$0xf]
    %v639 = vld [vmem:[%s636 + $0x8] sm:$0xf]
    %v640 = vld [vmem:[%s636 + $0xc] sm:$0xf]
    %v641 = vld [vmem:[%s636 + $0x10] sm:$0xf]
    %v642 = vld [vmem:[%s636 + $0x14] sm:$0xf]
    %v643 = vld [vmem:[%s636 + $0x18] sm:$0xf]
    %v644 = vld [vmem:[%s636 + $0x1c] sm:$0xf]
    %v645 = vld [vmem:[%s636 + $0x20] sm:$0xf]
    %v646 = vld [vmem:[%s636 + $0x24] sm:$0xf]
    %v647 = vld [vmem:[%s636 + $0x28] sm:$0xf]
    %v648 = vld [vmem:[%s636 + $0x2c] sm:$0xf]
    %v649 = vld [vmem:[%s636 + $0x30] sm:$0xf]
    %v650 = vld [vmem:[%s636 + $0x34] sm:$0xf]
    %v651 = vld [vmem:[%s636 + $0x38] sm:$0xf]
    %v652 = vld [vmem:[%s636 + $0x3c] sm:$0xf]
    %s653 = scalar_lea.vmem [#allocation3], 256
    %v654 = vld [vmem:[%s653] sm:$0xf]
    %v655 = vld [vmem:[%s653 + $0x4] sm:$0xf]
    %v656 = vld [vmem:[%s653 + $0x8] sm:$0xf]
    %v657 = vld [vmem:[%s653 + $0xc] sm:$0xf]
    %v658 = vld [vmem:[%s653 + $0x10] sm:$0xf]
    %v659 = vld [vmem:[%s653 + $0x14] sm:$0xf]
    %v660 = vld [vmem:[%s653 + $0x18] sm:$0xf]
    %v661 = vld [vmem:[%s653 + $0x1c] sm:$0xf]
    %v662 = vld [vmem:[%s653 + $0x20] sm:$0xf]
    %v663 = vld [vmem:[%s653 + $0x24] sm:$0xf]
    %v664 = vld [vmem:[%s653 + $0x28] sm:$0xf]
    %v665 = vld [vmem:[%s653 + $0x2c] sm:$0xf]
    %v666 = vld [vmem:[%s653 + $0x30] sm:$0xf]
    %v667 = vld [vmem:[%s653 + $0x34] sm:$0xf]
    %v668 = vld [vmem:[%s653 + $0x38] sm:$0xf]
    %v669 = vld [vmem:[%s653 + $0x3c] sm:$0xf]
    %v670 = vld [vmem:[%s2 + $0x3] sm:$0x1]
    %v671 = vld [vmem:[%s2 + $0x4] sm:$0x1]
    %v672 = vpack.c.bf16 %v621, %v620
    %v673 = vpack.c.bf16 %v623, %v622
    %v674 = vpack.c.bf16 %v625, %v624
    %v675 = vpack.c.bf16 %v627, %v626
    %v676 = vpack.c.bf16 %v629, %v628
    %v677 = vpack.c.bf16 %v631, %v630
    %v678 = vpack.c.bf16 %v633, %v632
    %v679 = vpack.c.bf16 %v635, %v634
    %v680 = vlaneseq
    %v681 = vshrl.u32 %v680, 7
    %v682 = vsub.s32 0, %v681
    %v683 = vrot.slane %v670, %v682
    %v700 = vunpack.c.l.b16 %v637
    %v701 = vunpack.c.l.b16 %v638
    %v702 = vunpack.c.l.b16 %v639
    %v703 = vunpack.c.l.b16 %v640
    %v704 = vunpack.c.l.b16 %v641
    %v705 = vunpack.c.l.b16 %v642
    %v706 = vunpack.c.l.b16 %v643
    %v707 = vunpack.c.l.b16 %v644
    %v708 = vunpack.c.l.b16 %v645
    %v709 = vunpack.c.l.b16 %v646
    %v710 = vunpack.c.l.b16 %v647
    %v711 = vunpack.c.l.b16 %v648
    %v712 = vunpack.c.l.b16 %v649
    %v713 = vunpack.c.l.b16 %v650
    %v714 = vunpack.c.l.b16 %v651
    %v715 = vunpack.c.l.b16 %v652
    %v716 = vpack.c.b16 %v701, %v700
    %v717 = vpack.c.b16 %v703, %v702
    %v718 = vpack.c.b16 %v705, %v704
    %v719 = vpack.c.b16 %v707, %v706
    %v720 = vpack.c.b16 %v709, %v708
    %v721 = vpack.c.b16 %v711, %v710
    %v722 = vpack.c.b16 %v713, %v712
    %v723 = vpack.c.b16 %v715, %v714
    %732 = vmatprep.subr.bf16.mxu0 0
    %733 = vmatpush1.bf16.msra.mxu0 %v716
    %734 = vmatprep.subr.bf16.mxu0 0
    %735 = vmatpush1.bf16.msra.mxu0 %v717
    %736 = vmatprep.subr.bf16.mxu0 0
    %737 = vmatpush1.bf16.msra.mxu0 %v718
    %738 = vmatprep.subr.bf16.mxu0 0
    %739 = vmatpush1.bf16.msra.mxu0 %v719
    %740 = vmatprep.subr.bf16.mxu0 0
    %741 = vmatpush1.bf16.msra.mxu0 %v720
    %742 = vmatprep.subr.bf16.mxu0 0
    %743 = vmatpush1.bf16.msra.mxu0 %v721
    %744 = vmatprep.subr.bf16.mxu0 0
    %745 = vmatpush1.bf16.msra.mxu0 %v722
    %746 = vmatprep.subr.bf16.mxu0 0
    %747 = vmatpush1.bf16.msra.mxu0 %v723
    %748 = vmatprep.subr.bf16.mxu0 0
    %749 = vmatpush1.bf16.msra.mxu0 0
    %750 = vmatprep.subr.bf16.mxu0 0
    %751 = vmatpush1.bf16.msra.mxu0 0
    %752 = vmatprep.subr.bf16.mxu0 0
    %753 = vmatpush1.bf16.msra.mxu0 0
    %754 = vmatprep.subr.bf16.mxu0 0
    %755 = vmatpush1.bf16.msra.mxu0 0
    %756 = vmatprep.subr.bf16.mxu0 0
    %757 = vmatpush1.bf16.msra.mxu0 0
    %758 = vmatprep.subr.bf16.mxu0 0
    %759 = vmatpush1.bf16.msra.mxu0 0
    %760 = vmatprep.subr.bf16.mxu0 0
    %761 = vmatpush1.bf16.msra.mxu0 0
    %762 = vmatprep.subr.bf16.mxu0 0
    %763 = vmatpush1.bf16.msra.mxu0 0
    %764 = vmatprep.mubr.bf16.mxu0 0
    %765 = vmatmul.mubr.bf16.gmra.mrb[0].mxu0 %v672
    %v766 = vpop.f32.mrb[0].mxu0
    %v767 = vadd.f32 %v683, %v766
    %v768 = vpop.f32.mrb[0].mxu0
    %v769 = vpop.f32.mrb[0].mxu0
    %v770 = vadd.f32 %v683, %v769
    %v771 = vpop.f32.mrb[0].mxu0
    %772 = vmatprep.mubr.bf16.mxu0 0
    %773 = vmatmul.mubr.bf16.gmra.mrb[0].mxu0 %v673
    %v774 = vpop.f32.mrb[0].mxu0
    %v775 = vadd.f32 %v683, %v774
    %v776 = vpop.f32.mrb[0].mxu0
    %v777 = vpop.f32.mrb[0].mxu0
    %v778 = vadd.f32 %v683, %v777
    %v779 = vpop.f32.mrb[0].mxu0
    %780 = vmatprep.mubr.bf16.mxu0 0
    %781 = vmatmul.mubr.bf16.gmra.mrb[0].mxu0 %v674
    %v782 = vpop.f32.mrb[0].mxu0
    %v783 = vadd.f32 %v683, %v782
    %v784 = vpop.f32.mrb[0].mxu0
    %v785 = vpop.f32.mrb[0].mxu0
    %v786 = vadd.f32 %v683, %v785
    %v787 = vpop.f32.mrb[0].mxu0
    %788 = vmatprep.mubr.bf16.mxu0 0
    %789 = vmatmul.mubr.bf16.gmra.mrb[0].mxu0 %v675
    %v790 = vpop.f32.mrb[0].mxu0
    %v791 = vadd.f32 %v683, %v790
    %v792 = vpop.f32.mrb[0].mxu0
    %v793 = vpop.f32.mrb[0].mxu0
    %v794 = vadd.f32 %v683, %v793
    %v795 = vpop.f32.mrb[0].mxu0
    %796 = vmatprep.mubr.bf16.mxu0 0
    %797 = vmatmul.mubr.bf16.gmra.mrb[0].mxu0 %v676
    %v798 = vpop.f32.mrb[0].mxu0
    %v799 = vadd.f32 %v683, %v798
    %v800 = vpop.f32.mrb[0].mxu0
    %v801 = vpop.f32.mrb[0].mxu0
    %v802 = vadd.f32 %v683, %v801
    %v803 = vpop.f32.mrb[0].mxu0
    %804 = vmatprep.mubr.bf16.mxu0 0
    %805 = vmatmul.mubr.bf16.gmra.mrb[0].mxu0 %v677
    %v806 = vpop.f32.mrb[0].mxu0
    %v807 = vadd.f32 %v683, %v806
    %v808 = vpop.f32.mrb[0].mxu0
    %v809 = vpop.f32.mrb[0].mxu0
    %v810 = vadd.f32 %v683, %v809
    %v811 = vpop.f32.mrb[0].mxu0
    %812 = vmatprep.mubr.bf16.mxu0 0
    %813 = vmatmul.mubr.bf16.gmra.mrb[0].mxu0 %v678
    %v814 = vpop.f32.mrb[0].mxu0
    %v815 = vadd.f32 %v683, %v814
    %v816 = vpop.f32.mrb[0].mxu0
    %v817 = vpop.f32.mrb[0].mxu0
    %v818 = vadd.f32 %v683, %v817
    %v819 = vpop.f32.mrb[0].mxu0
    %820 = vmatprep.mubr.bf16.mxu0 0
    %821 = vmatmul.mubr.bf16.gmra.mrb[0].mxu0 %v679
    %v822 = vpop.f32.mrb[0].mxu0
    %v823 = vadd.f32 %v683, %v822
    %v824 = vpop.f32.mrb[0].mxu0
    %v825 = vpop.f32.mrb[0].mxu0
    %v826 = vadd.f32 %v683, %v825
    %v827 = vpop.f32.mrb[0].mxu0
    %828 = vdwg.mxu0
    %v829 = vmax.f32 %v767, 0.0
    %v830 = vmax.f32 %v770, 0.0
    %v831 = vmax.f32 %v775, 0.0
    %v832 = vmax.f32 %v778, 0.0
    %v833 = vmax.f32 %v783, 0.0
    %v834 = vmax.f32 %v786, 0.0
    %v835 = vmax.f32 %v791, 0.0
    %v836 = vmax.f32 %v794, 0.0
    %v837 = vmax.f32 %v799, 0.0
    %v838 = vmax.f32 %v802, 0.0
    %v839 = vmax.f32 %v807, 0.0
    %v840 = vmax.f32 %v810, 0.0
    %v841 = vmax.f32 %v815, 0.0
    %v842 = vmax.f32 %v818, 0.0
    %v843 = vmax.f32 %v823, 0.0
    %v844 = vmax.f32 %v826, 0.0
    %v845 = vpack.c.bf16 %v830, %v829
    %v846 = vpack.c.bf16 %v832, %v831
    %v847 = vpack.c.bf16 %v834, %v833
    %v848 = vpack.c.bf16 %v836, %v835
    %v849 = vpack.c.bf16 %v838, %v837
    %v850 = vpack.c.bf16 %v840, %v839
    %v851 = vpack.c.bf16 %v842, %v841
    %v852 = vpack.c.bf16 %v844, %v843
    %v853 = vlaneseq
    %v854 = vshrl.u32 %v853, 7
    %v855 = vsub.s32 0, %v854
    %v856 = vrot.slane %v671, %v855
    %v873 = vunpack.c.l.b16 %v654
    %v874 = vunpack.c.l.b16 %v655
    %v875 = vunpack.c.l.b16 %v656
    %v876 = vunpack.c.l.b16 %v657
    %v877 = vunpack.c.l.b16 %v658
    %v878 = vunpack.c.l.b16 %v659
    %v879 = vunpack.c.l.b16 %v660
    %v880 = vunpack.c.l.b16 %v661
    %v881 = vunpack.c.l.b16 %v662
    %v882 = vunpack.c.l.b16 %v663
    %v883 = vunpack.c.l.b16 %v664
    %v884 = vunpack.c.l.b16 %v665
    %v885 = vunpack.c.l.b16 %v666
    %v886 = vunpack.c.l.b16 %v667
    %v887 = vunpack.c.l.b16 %v668
    %v888 = vunpack.c.l.b16 %v669
    %v889 = vpack.c.b16 %v874, %v873
    %v890 = vpack.c.b16 %v876, %v875
    %v891 = vpack.c.b16 %v878, %v877
    %v892 = vpack.c.b16 %v880, %v879
    %v893 = vpack.c.b16 %v882, %v881
    %v894 = vpack.c.b16 %v884, %v883
    %v895 = vpack.c.b16 %v886, %v885
    %v896 = vpack.c.b16 %v888, %v887
    %905 = vmatprep.subr.bf16.mxu0 0
    %906 = vmatpush1.bf16.msra.mxu0 %v889
    %907 = vmatprep.subr.bf16.mxu0 0
    %908 = vmatpush1.bf16.msra.mxu0 %v890
    %909 = vmatprep.subr.bf16.mxu0 0
    %910 = vmatpush1.bf16.msra.mxu0 %v891
    %911 = vmatprep.subr.bf16.mxu0 0
    %912 = vmatpush1.bf16.msra.mxu0 %v892
    %913 = vmatprep.subr.bf16.mxu0 0
    %914 = vmatpush1.bf16.msra.mxu0 %v893
    %915 = vmatprep.subr.bf16.mxu0 0
    %916 = vmatpush1.bf16.msra.mxu0 %v894
    %917 = vmatprep.subr.bf16.mxu0 0
    %918 = vmatpush1.bf16.msra.mxu0 %v895
    %919 = vmatprep.subr.bf16.mxu0 0
    %920 = vmatpush1.bf16.msra.mxu0 %v896
    %921 = vmatprep.subr.bf16.mxu0 0
    %922 = vmatpush1.bf16.msra.mxu0 0
    %923 = vmatprep.subr.bf16.mxu0 0
    %924 = vmatpush1.bf16.msra.mxu0 0
    %925 = vmatprep.subr.bf16.mxu0 0
    %926 = vmatpush1.bf16.msra.mxu0 0
    %927 = vmatprep.subr.bf16.mxu0 0
    %928 = vmatpush1.bf16.msra.mxu0 0
    %929 = vmatprep.subr.bf16.mxu0 0
    %930 = vmatpush1.bf16.msra.mxu0 0
    %931 = vmatprep.subr.bf16.mxu0 0
    %932 = vmatpush1.bf16.msra.mxu0 0
    %933 = vmatprep.subr.bf16.mxu0 0
    %934 = vmatpush1.bf16.msra.mxu0 0
    %935 = vmatprep.subr.bf16.mxu0 0
    %936 = vmatpush1.bf16.msra.mxu0 0
    %937 = vmatprep.mubr.bf16.mxu0 0
    %938 = vmatmul.mubr.bf16.gmra.mrb[0].mxu0 %v845
    %v939 = vpop.f32.mrb[0].mxu0
    %v940 = vadd.f32 %v856, %v939
    %v941 = vpop.f32.mrb[0].mxu0
    %v942 = vpop.f32.mrb[0].mxu0
    %v943 = vadd.f32 %v856, %v942
    %v944 = vpop.f32.mrb[0].mxu0
    %945 = vmatprep.mubr.bf16.mxu0 0
    %946 = vmatmul.mubr.bf16.gmra.mrb[0].mxu0 %v846
    %v947 = vpop.f32.mrb[0].mxu0
    %v948 = vadd.f32 %v856, %v947
    %v949 = vpop.f32.mrb[0].mxu0
    %v950 = vpop.f32.mrb[0].mxu0
    %v951 = vadd.f32 %v856, %v950
    %v952 = vpop.f32.mrb[0].mxu0
    %953 = vmatprep.mubr.bf16.mxu0 0
    %954 = vmatmul.mubr.bf16.gmra.mrb[0].mxu0 %v847
    %v955 = vpop.f32.mrb[0].mxu0
    %v956 = vadd.f32 %v856, %v955
    %v957 = vpop.f32.mrb[0].mxu0
    %v958 = vpop.f32.mrb[0].mxu0
    %v959 = vadd.f32 %v856, %v958
    %v960 = vpop.f32.mrb[0].mxu0
    %961 = vmatprep.mubr.bf16.mxu0 0
    %962 = vmatmul.mubr.bf16.gmra.mrb[0].mxu0 %v848
    %v963 = vpop.f32.mrb[0].mxu0
    %v964 = vadd.f32 %v856, %v963
    %v965 = vpop.f32.mrb[0].mxu0
    %v966 = vpop.f32.mrb[0].mxu0
    %v967 = vadd.f32 %v856, %v966
    %v968 = vpop.f32.mrb[0].mxu0
    %969 = vmatprep.mubr.bf16.mxu0 0
    %970 = vmatmul.mubr.bf16.gmra.mrb[0].mxu0 %v849
    %v971 = vpop.f32.mrb[0].mxu0
    %v972 = vadd.f32 %v856, %v971
    %v973 = vpop.f32.mrb[0].mxu0
    %v974 = vpop.f32.mrb[0].mxu0
    %v975 = vadd.f32 %v856, %v974
    %v976 = vpop.f32.mrb[0].mxu0
    %977 = vmatprep.mubr.bf16.mxu0 0
    %978 = vmatmul.mubr.bf16.gmra.mrb[0].mxu0 %v850
    %v979 = vpop.f32.mrb[0].mxu0
    %v980 = vadd.f32 %v856, %v979
    %v981 = vpop.f32.mrb[0].mxu0
    %v982 = vpop.f32.mrb[0].mxu0
    %v983 = vadd.f32 %v856, %v982
    %v984 = vpop.f32.mrb[0].mxu0
    %985 = vmatprep.mubr.bf16.mxu0 0
    %986 = vmatmul.mubr.bf16.gmra.mrb[0].mxu0 %v851
    %v987 = vpop.f32.mrb[0].mxu0
    %v988 = vadd.f32 %v856, %v987
    %v989 = vpop.f32.mrb[0].mxu0
    %v990 = vpop.f32.mrb[0].mxu0
    %v991 = vadd.f32 %v856, %v990
    %v992 = vpop.f32.mrb[0].mxu0
    %993 = vmatprep.mubr.bf16.mxu0 0
    %994 = vmatmul.mubr.bf16.gmra.mrb[0].mxu0 %v852
    %v995 = vpop.f32.mrb[0].mxu0
    %v996 = vadd.f32 %v856, %v995
    %v997 = vpop.f32.mrb[0].mxu0
    %v998 = vpop.f32.mrb[0].mxu0
    %v999 = vadd.f32 %v856, %v998
    %v1000 = vpop.f32.mrb[0].mxu0
    %1001 = vdwg.mxu0
    %v1002 = vadd.f32 %v620, %v940
    %v1003 = vadd.f32 %v621, %v943
    %v1004 = vadd.f32 %v622, %v948
    %v1005 = vadd.f32 %v623, %v951
    %v1006 = vadd.f32 %v624, %v956
    %v1007 = vadd.f32 %v625, %v959
    %v1008 = vadd.f32 %v626, %v964
    %v1009 = vadd.f32 %v627, %v967
    %v1010 = vadd.f32 %v628, %v972
    %v1011 = vadd.f32 %v629, %v975
    %v1012 = vadd.f32 %v630, %v980
    %v1013 = vadd.f32 %v631, %v983
    %v1014 = vadd.f32 %v632, %v988
    %v1015 = vadd.f32 %v633, %v991
    %v1016 = vadd.f32 %v634, %v996
    %v1017 = vadd.f32 %v635, %v999
    %v1018 = vmax.f32 %v1002, 0.0
    %v1019 = vmax.f32 %v1003, 0.0
    %v1020 = vmax.f32 %v1004, 0.0
    %v1021 = vmax.f32 %v1005, 0.0
    %v1022 = vmax.f32 %v1006, 0.0
    %v1023 = vmax.f32 %v1007, 0.0
    %v1024 = vmax.f32 %v1008, 0.0
    %v1025 = vmax.f32 %v1009, 0.0
    %v1026 = vmax.f32 %v1010, 0.0
    %v1027 = vmax.f32 %v1011, 0.0
    %v1028 = vmax.f32 %v1012, 0.0
    %v1029 = vmax.f32 %v1013, 0.0
    %v1030 = vmax.f32 %v1014, 0.0
    %v1031 = vmax.f32 %v1015, 0.0
    %v1032 = vmax.f32 %v1016, 0.0
    %v1033 = vmax.f32 %v1017, 0.0
    %v1034 = vld [vmem:[%s2 + $0x5] sm:$0x1]
    %v1035 = vpack.c.bf16 %v1034, %v1034
    %v1036 = vld [vmem:[%s2 + $0x6] sm:$0x1]
    %v1037 = vpack.c.bf16 %v1019, %v1018
    %v1038 = vpack.c.bf16 %v1021, %v1020
    %v1039 = vpack.c.bf16 %v1023, %v1022
    %v1040 = vpack.c.bf16 %v1025, %v1024
    %v1041 = vpack.c.bf16 %v1027, %v1026
    %v1042 = vpack.c.bf16 %v1029, %v1028
    %v1043 = vpack.c.bf16 %v1031, %v1030
    %v1044 = vpack.c.bf16 %v1033, %v1032
    %1046 = vset.pattern.permute.xlu0 0
    %1047 = vperm.xlu0 %1046, %v1036
    %v1048 = vpop.permute.xlu0 %1047
    %1050 = vmatprep.subr.bf16.mxu0 0
    %1051 = vmatpush1.bf16.xpose.msra.mxu0 %v1037
    %1052 = vmatprep.subr.bf16.mxu0 0
    %1053 = vmatpush1.bf16.xpose.msra.mxu0 %v1038
    %1054 = vmatprep.subr.bf16.mxu0 0
    %1055 = vmatpush1.bf16.xpose.msra.mxu0 %v1039
    %1056 = vmatprep.subr.bf16.mxu0 0
    %1057 = vmatpush1.bf16.xpose.msra.mxu0 %v1040
    %1058 = vmatprep.subr.bf16.mxu0 0
    %1059 = vmatpush1.bf16.xpose.msra.mxu0 %v1041
    %1060 = vmatprep.subr.bf16.mxu0 0
    %1061 = vmatpush1.bf16.xpose.msra.mxu0 %v1042
    %1062 = vmatprep.subr.bf16.mxu0 0
    %1063 = vmatpush1.bf16.xpose.msra.mxu0 %v1043
    %1064 = vmatprep.subr.bf16.mxu0 0
    %1065 = vmatpush1.bf16.xpose.msra.mxu0 %v1044
    %1066 = vmatprep.subr.bf16.mxu0 0
    %1067 = vmatpush1.bf16.xpose.msra.mxu0 0
    %1068 = vmatprep.subr.bf16.mxu0 0
    %1069 = vmatpush1.bf16.xpose.msra.mxu0 0
    %1070 = vmatprep.subr.bf16.mxu0 0
    %1071 = vmatpush1.bf16.xpose.msra.mxu0 0
    %1072 = vmatprep.subr.bf16.mxu0 0
    %1073 = vmatpush1.bf16.xpose.msra.mxu0 0
    %1074 = vmatprep.subr.bf16.mxu0 0
    %1075 = vmatpush1.bf16.xpose.msra.mxu0 0
    %1076 = vmatprep.subr.bf16.mxu0 0
    %1077 = vmatpush1.bf16.xpose.msra.mxu0 0
    %1078 = vmatprep.subr.bf16.mxu0 0
    %1079 = vmatpush1.bf16.xpose.msra.mxu0 0
    %1080 = vmatprep.subr.bf16.mxu0 0
    %1081 = vmatpush1.bf16.xpose.msra.mxu0 0
    %1082 = vmatprep.mubr.bf16.mxu0 0
    %1083 = vmatmul.mubr.bf16.gmra.mrb[0].mxu0 %v1035
    %v1084 = vpop.f32.mrb[0].mxu0
    %v1085 = vadd.f32 %v1048, %v1084
    %v1086 = vpop.f32.mrb[0].mxu0
    %v1087 = vpop.f32.mrb[0].mxu0
    %v1088 = vpop.f32.mrb[0].mxu0
    %1089 = vdwg.mxu0
    %1090 = vst [vmem:[#allocation6] sm:$0x1] %v1085
    // Predicated region
    $region18: #{tpu_custom_call.1} parent=1 // pred_check
      _
    $region19: #{tpu_custom_call.1} parent=1 // pred_check_branch
      %1092 = sbr.rel (0) target = $region21
    $region20: #{tpu_custom_call.1} parent=1 // pred_region
      %s1094 = ssub.s32 16, 16
      %1095 = vsyncadd [#allocation5], %s1094
      %s1097 = sshll.u32 [#allocation6], 4
      %s1098 = int_to_ptr.vmem [resolvable:$true] %s1097
      %1100 = dma.vmem_to_hbm [thread:$0]  %s1098, 16, %s3, [#allocation5]
    $region21: #{tpu_custom_call.1} parent=1 // pred_fallthru
      _
    // Predicated region
    $region22: #{tpu_custom_call.1} parent=1 // pred_check
      _
    $region23: #{tpu_custom_call.1} parent=1 // pred_check_branch
      %1102 = sbr.rel (0) target = $region25
    $region24: #{tpu_custom_call.1} parent=1 // pred_region
      %1103 = dma.done [#allocation5], 16
    $region25: #{tpu_custom_call.1} parent=1 // pred_fallthru
      _
    %1104 = vsyncpa [#allocation4], 1
    %1105 = vsyncpa [#allocation5], 1

</llo_original>
